<compile_context>
chip_gen: v6e
topology: v6e:2x2x1
jax: 0.10.0
libtpu: 0.0.40
codegen_flags: <defaults>
</compile_context>

<pallas_src>
import jax
import jax.numpy as jnp
from jax import lax
from jax.experimental import pallas as pl
from jax.experimental.pallas import tpu as pltpu

NUM_EXPERTS = 4
CONTEXT_SIZE = 8
INPUT_SIZE = 1
HIDDEN_SIZE = 32
OUTPUT_SIZE = 1

EH = NUM_EXPERTS * HIDDEN_SIZE       # 128 — lane-packed (expert, hidden) axis
DATA_LANES = 16                      # context(8) | x(1) | trace(E) | pad(3)
W2_ROW = 3                           # pa rows 3..3+E-1 hold transposed w2
OUT_LANES = 128                      # lane-dense (B,128) output slab


def _samoe_kernel(data_ref, pa_ref, out_ref):
    """Single invocation; everything resident in VMEM (tiny shapes).

    data_ref : (B, 16)  lanes 0..7 = raw interleaved context (x0,y0,...,x3,y3),
                        lane 8 = model input x, lanes 9..9+E-1 = expert_trace
                        (row 0 valid), remaining lanes zero.
    pa_ref   : (8, 128) row0 = packed w1 (lane k = e*H + h), row1 = packed b1,
                        row2[:E] = b2, rows 3..6 = block-structured w2t (E, E*H).
    out_ref  : (B, 128) [combined | weights | new_trace(row 0) | zeros].
    """
    B = data_ref.shape[0]
    E = NUM_EXPERTS

    w1p = pa_ref[0:1, :]                    # (1, EH)
    b1p = pa_ref[1:2, :]                    # (1, EH)
    b2p = pa_ref[2:3, 0:E]                  # (1, E)
    w2t = pa_ref[W2_ROW:W2_ROW + E, :]      # (E, EH)  block-structured, lane-dense

    def expert_eval(inp):
        # inp: (B, 1) -> all-expert outputs (B, E): one relu tile + one MXU dot
        h = jnp.maximum(inp * w1p + b1p, 0.0)                       # (B, EH)
        return lax.dot_general(
            h, w2t, (((1,), (1,)), ((), ())),
            preferred_element_type=jnp.float32) + b2p               # (B, E)

    # ---- gating path: per-context-point unrolled loop (4 points per row)
    err = jnp.zeros((B, E), jnp.float32)
    for p in range(CONTEXT_SIZE // 2):
        cx = data_ref[:, 2 * p:2 * p + 1]                           # (B, 1)
        cy = data_ref[:, 2 * p + 1:2 * p + 2]                       # (B, 1)
        pred = expert_eval(cx)                                      # (B, E)
        err = err + (pred - cy) ** 2

    # softmax(-err) over the expert axis (f32, max-subtracted, exact division)
    neg = -err
    m = jnp.max(neg, axis=1, keepdims=True)
    ex = jnp.exp(neg - m)
    w = ex / jnp.sum(ex, axis=1, keepdims=True)                     # (B, E)

    # ---- expert path on the model input
    x_in = data_ref[:, CONTEXT_SIZE:CONTEXT_SIZE + 1]               # (B, 1)
    outs = expert_eval(x_in)                                        # (B, E)
    combined = jnp.sum(w * outs, axis=1, keepdims=True)             # (B, 1)

    # ---- trace update (valid on row 0 only)
    trace = data_ref[0:1, CONTEXT_SIZE + 1:CONTEXT_SIZE + 1 + E]    # (1, E)
    sum_w = jnp.sum(w, axis=0, keepdims=True)                       # (1, E)
    rows = lax.broadcasted_iota(jnp.int32, (B, E), 0)
    new_trace_blk = jnp.where(rows == 0, trace + sum_w, 0.0)        # (B, E)

    # ---- single unmasked full-tile store of the lane-dense output slab
    pad = jnp.zeros((B, OUT_LANES - 1 - 2 * E), jnp.float32)
    out_ref[...] = jnp.concatenate([combined, w, new_trace_blk, pad], axis=1)


def init_params(key, num_experts=NUM_EXPERTS, hidden=HIDDEN_SIZE,
                in_size=INPUT_SIZE, out_size=OUTPUT_SIZE):
    """Deterministic PyTorch-Linear-style uniform init, stacked over experts."""
    k1, k2, k3, k4 = jax.random.split(key, 4)
    bound1 = 1.0 / jnp.sqrt(jnp.float32(in_size))
    bound2 = 1.0 / jnp.sqrt(jnp.float32(hidden))
    w1 = jax.random.uniform(k1, (num_experts, in_size, hidden), jnp.float32,
                            -bound1, bound1)
    b1 = jax.random.uniform(k2, (num_experts, 1, hidden), jnp.float32,
                            -bound1, bound1)
    w2 = jax.random.uniform(k3, (num_experts, hidden, out_size), jnp.float32,
                            -bound2, bound2)
    b2 = jax.random.uniform(k4, (num_experts, 1, out_size), jnp.float32,
                            -bound2, bound2)
    return (w1, b1, w2, b2)


def pack_params(params):
    """Pack ALL parameters into one perfectly tiled (8, 128) f32 block.

    Row 0: w1 lane-packed (lane k = e*H + h).  Row 1: b1 lane-packed.
    Row 2[:E]: b2.  Rows 3..3+E-1: w2t[e, k] = w2[e, k - e*H, 0] for
    e*H <= k < (e+1)*H, else 0 (block structure along the lanes).
    Call ONCE per parameter update — not per forward step.
    """
    w1, b1, w2, b2 = params
    E, _, H = w1.shape
    eh = E * H
    w1p = w1.reshape(1, eh).astype(jnp.float32)
    b1p = b1.reshape(1, eh).astype(jnp.float32)
    b2row = jnp.zeros((1, eh), jnp.float32).at[0, :E].set(
        b2.reshape(E).astype(jnp.float32))
    eye = jnp.eye(E, dtype=jnp.float32)
    w2t = (eye[:, :, None] * w2[:, :, 0].astype(jnp.float32)[None, :, :]
           ).reshape(E, eh)                                         # (E, EH)
    n_pad = 8 - (3 + E)
    return jnp.concatenate(
        [w1p, b1p, b2row, w2t, jnp.zeros((n_pad, eh), jnp.float32)], axis=0)


def _pack_data(context, x, expert_trace):
    """Pack per-step data into a single (B, 16) lane-packed slab."""
    B = context.shape[0]
    E = NUM_EXPERTS
    trace_rows = jnp.concatenate(
        [expert_trace.reshape(1, E).astype(jnp.float32),
         jnp.zeros((B - 1, E), jnp.float32)], axis=0)               # row 0 valid
    pad = jnp.zeros((B, DATA_LANES - CONTEXT_SIZE - INPUT_SIZE - E), jnp.float32)
    return jnp.concatenate(
        [context.astype(jnp.float32), x.astype(jnp.float32), trace_rows, pad],
        axis=1)


def samoe_forward(context, x, packed_params, expert_trace):
    """Returns (combined_output (B,1), expert_weights (B,E), new_expert_trace (1,E)).

    `packed_params` is the (8,128) slab from pack_params() (hoisted out of the
    per-step path).
    """
    B = context.shape[0]
    E = NUM_EXPERTS
    data = _pack_data(context, x, expert_trace)

    vmem = pl.BlockSpec(memory_space=pltpu.MemorySpace.VMEM)
    slab = pl.pallas_call(
        _samoe_kernel,
        out_shape=jax.ShapeDtypeStruct((B, OUT_LANES), jnp.float32),
        in_specs=[vmem, vmem],
        out_specs=vmem,
    )(data, packed_params)

    combined = slab[:, 0:1]
    weights = slab[:, 1:1 + E]
    new_trace = slab[0:1, 1 + E:1 + 2 * E]
    return combined, weights, new_trace


def samoe_forward_ref(context, x, params, expert_trace):
    """Pure-JAX reference mirroring the PyTorch forward."""
    w1, b1, w2, b2 = params
    E = w1.shape[0]
    B = context.shape[0]
    cx = context[:, 0::2].reshape(-1, 1)                       # (N, 1)
    cy = context[:, 1::2].reshape(-1, 1)                       # (N, 1)

    h = jax.nn.relu(cx[None] * w1 + b1)                        # (E, N, H)
    pred = jnp.einsum('enh,eho->eno', h, w2) + b2              # (E, N, 1)
    err = ((pred - cy[None]) ** 2).reshape(E, B, 4).sum(-1).T  # (B, E)
    w = jax.nn.softmax(-err, axis=1)                           # (B, E)

    hx = jax.nn.relu(x[None] * w1 + b1)                        # (E, B, H)
    out_e = jnp.einsum('ebh,eho->ebo', hx, w2) + b2            # (E, B, 1)
    combined = jnp.sum(w[..., None] * jnp.transpose(out_e, (1, 0, 2)), axis=1)
    new_trace = expert_trace + jnp.sum(w, axis=0, keepdims=True)
    return combined, w, new_trace


if __name__ == "__main__":
    key = jax.random.PRNGKey(0)
    kp, kc, kx = jax.random.split(key, 3)

    B = 8
    params = init_params(kp)
    packed_params = pack_params(params)   # packed ONCE per parameter update
    context = jax.random.normal(kc, (B, CONTEXT_SIZE), jnp.float32)
    x = jax.random.normal(kx, (B, INPUT_SIZE), jnp.float32)
    expert_trace = jnp.ones((1, NUM_EXPERTS), jnp.float32)     # self.expert_trace

    out, weights, new_trace = samoe_forward(context, x, packed_params, expert_trace)
    jax.block_until_ready((out, weights, new_trace))

    ref_out, ref_w, ref_trace = samoe_forward_ref(context, x, params, expert_trace)
    assert jnp.allclose(out, ref_out, atol=1e-4, rtol=1e-4)
    assert jnp.allclose(weights, ref_w, atol=1e-4, rtol=1e-4)
    assert jnp.allclose(new_trace, ref_trace, atol=1e-4, rtol=1e-4)

    print("KERNEL_OK")
</pallas_src>

<mosaic_0001>
module attributes {stable_mosaic.version = 11 : i64} {
  func.func @_samoe_kernel(%arg0: memref<8x16xf32, #tpu.memory_space<vmem>>, %arg1: memref<8x128xf32, #tpu.memory_space<vmem>>, %arg2: memref<8x128xf32, #tpu.memory_space<vmem>>) attributes {dimension_semantics = [], scalar_prefetch = 0 : i64, scratch_operands = 0 : i64, tpu.core_type = #tpu.core_type<tc>} {
    %c0 = arith.constant 0 : index
    %c0_0 = arith.constant 0 : index
    %0 = vector.load %arg1[%c0, %c0_0] : memref<8x128xf32, #tpu.memory_space<vmem>>, vector<1x128xf32>
    %c1 = arith.constant 1 : index
    %c0_1 = arith.constant 0 : index
    %1 = vector.load %arg1[%c1, %c0_1] : memref<8x128xf32, #tpu.memory_space<vmem>>, vector<1x128xf32>
    %c2 = arith.constant 2 : index
    %c0_2 = arith.constant 0 : index
    %2 = vector.load %arg1[%c2, %c0_2] : memref<8x128xf32, #tpu.memory_space<vmem>>, vector<1x4xf32>
    %c3 = arith.constant 3 : index
    %c0_3 = arith.constant 0 : index
    %3 = vector.load %arg1[%c3, %c0_3] : memref<8x128xf32, #tpu.memory_space<vmem>>, vector<4x128xf32>
    %cst = arith.constant 0.000000e+00 : f32
    %4 = vector.broadcast %cst : f32 to vector<8x4xf32>
    %c0_4 = arith.constant 0 : index
    %c0_5 = arith.constant 0 : index
    %5 = vector.load %arg0[%c0_4, %c0_5] : memref<8x16xf32, #tpu.memory_space<vmem>>, vector<8x1xf32>
    %c0_6 = arith.constant 0 : index
    %c1_7 = arith.constant 1 : index
    %6 = vector.load %arg0[%c0_6, %c1_7] : memref<8x16xf32, #tpu.memory_space<vmem>>, vector<8x1xf32>
    %7 = vector.broadcast %5 : vector<8x1xf32> to vector<8x128xf32>
    %8 = vector.broadcast %0 : vector<1x128xf32> to vector<8x128xf32>
    %9 = arith.mulf %7, %8 : vector<8x128xf32>
    %10 = vector.broadcast %1 : vector<1x128xf32> to vector<8x128xf32>
    %11 = arith.addf %9, %10 : vector<8x128xf32>
    %cst_8 = arith.constant 0.000000e+00 : f32
    %12 = vector.broadcast %cst_8 : f32 to vector<8x128xf32>
    %13 = arith.maximumf %11, %12 : vector<8x128xf32>
    %cst_9 = arith.constant dense<0.000000e+00> : vector<8x4xf32>
    %14 = tpu.matmul %13, %3, %cst_9 {dimension_numbers = #tpu.dot_dimension_numbers<[1], [1], [0], [0], [0, 0, 1, 0], [], []>} : vector<8x128xf32>, vector<4x128xf32>, vector<8x4xf32> -> vector<8x4xf32>
    %15 = vector.broadcast %2 : vector<1x4xf32> to vector<8x4xf32>
    %16 = arith.addf %14, %15 : vector<8x4xf32>
    %17 = vector.broadcast %6 : vector<8x1xf32> to vector<8x4xf32>
    %18 = arith.subf %16, %17 : vector<8x4xf32>
    %19 = arith.mulf %18, %18 : vector<8x4xf32>
    %20 = arith.addf %4, %19 : vector<8x4xf32>
    %c0_10 = arith.constant 0 : index
    %c2_11 = arith.constant 2 : index
    %21 = vector.load %arg0[%c0_10, %c2_11] : memref<8x16xf32, #tpu.memory_space<vmem>>, vector<8x1xf32>
    %c0_12 = arith.constant 0 : index
    %c3_13 = arith.constant 3 : index
    %22 = vector.load %arg0[%c0_12, %c3_13] : memref<8x16xf32, #tpu.memory_space<vmem>>, vector<8x1xf32>
    %23 = vector.broadcast %21 : vector<8x1xf32> to vector<8x128xf32>
    %24 = vector.broadcast %0 : vector<1x128xf32> to vector<8x128xf32>
    %25 = arith.mulf %23, %24 : vector<8x128xf32>
    %26 = vector.broadcast %1 : vector<1x128xf32> to vector<8x128xf32>
    %27 = arith.addf %25, %26 : vector<8x128xf32>
    %cst_14 = arith.constant 0.000000e+00 : f32
    %28 = vector.broadcast %cst_14 : f32 to vector<8x128xf32>
    %29 = arith.maximumf %27, %28 : vector<8x128xf32>
    %cst_15 = arith.constant dense<0.000000e+00> : vector<8x4xf32>
    %30 = tpu.matmul %29, %3, %cst_15 {dimension_numbers = #tpu.dot_dimension_numbers<[1], [1], [0], [0], [0, 0, 1, 0], [], []>} : vector<8x128xf32>, vector<4x128xf32>, vector<8x4xf32> -> vector<8x4xf32>
    %31 = vector.broadcast %2 : vector<1x4xf32> to vector<8x4xf32>
    %32 = arith.addf %30, %31 : vector<8x4xf32>
    %33 = vector.broadcast %22 : vector<8x1xf32> to vector<8x4xf32>
    %34 = arith.subf %32, %33 : vector<8x4xf32>
    %35 = arith.mulf %34, %34 : vector<8x4xf32>
    %36 = arith.addf %20, %35 : vector<8x4xf32>
    %c0_16 = arith.constant 0 : index
    %c4 = arith.constant 4 : index
    %37 = vector.load %arg0[%c0_16, %c4] : memref<8x16xf32, #tpu.memory_space<vmem>>, vector<8x1xf32>
    %c0_17 = arith.constant 0 : index
    %c5 = arith.constant 5 : index
    %38 = vector.load %arg0[%c0_17, %c5] : memref<8x16xf32, #tpu.memory_space<vmem>>, vector<8x1xf32>
    %39 = vector.broadcast %37 : vector<8x1xf32> to vector<8x128xf32>
    %40 = vector.broadcast %0 : vector<1x128xf32> to vector<8x128xf32>
    %41 = arith.mulf %39, %40 : vector<8x128xf32>
    %42 = vector.broadcast %1 : vector<1x128xf32> to vector<8x128xf32>
    %43 = arith.addf %41, %42 : vector<8x128xf32>
    %cst_18 = arith.constant 0.000000e+00 : f32
    %44 = vector.broadcast %cst_18 : f32 to vector<8x128xf32>
    %45 = arith.maximumf %43, %44 : vector<8x128xf32>
    %cst_19 = arith.constant dense<0.000000e+00> : vector<8x4xf32>
    %46 = tpu.matmul %45, %3, %cst_19 {dimension_numbers = #tpu.dot_dimension_numbers<[1], [1], [0], [0], [0, 0, 1, 0], [], []>} : vector<8x128xf32>, vector<4x128xf32>, vector<8x4xf32> -> vector<8x4xf32>
    %47 = vector.broadcast %2 : vector<1x4xf32> to vector<8x4xf32>
    %48 = arith.addf %46, %47 : vector<8x4xf32>
    %49 = vector.broadcast %38 : vector<8x1xf32> to vector<8x4xf32>
    %50 = arith.subf %48, %49 : vector<8x4xf32>
    %51 = arith.mulf %50, %50 : vector<8x4xf32>
    %52 = arith.addf %36, %51 : vector<8x4xf32>
    %c0_20 = arith.constant 0 : index
    %c6 = arith.constant 6 : index
    %53 = vector.load %arg0[%c0_20, %c6] : memref<8x16xf32, #tpu.memory_space<vmem>>, vector<8x1xf32>
    %c0_21 = arith.constant 0 : index
    %c7 = arith.constant 7 : index
    %54 = vector.load %arg0[%c0_21, %c7] : memref<8x16xf32, #tpu.memory_space<vmem>>, vector<8x1xf32>
    %55 = vector.broadcast %53 : vector<8x1xf32> to vector<8x128xf32>
    %56 = vector.broadcast %0 : vector<1x128xf32> to vector<8x128xf32>
    %57 = arith.mulf %55, %56 : vector<8x128xf32>
    %58 = vector.broadcast %1 : vector<1x128xf32> to vector<8x128xf32>
    %59 = arith.addf %57, %58 : vector<8x128xf32>
    %cst_22 = arith.constant 0.000000e+00 : f32
    %60 = vector.broadcast %cst_22 : f32 to vector<8x128xf32>
    %61 = arith.maximumf %59, %60 : vector<8x128xf32>
    %cst_23 = arith.constant dense<0.000000e+00> : vector<8x4xf32>
    %62 = tpu.matmul %61, %3, %cst_23 {dimension_numbers = #tpu.dot_dimension_numbers<[1], [1], [0], [0], [0, 0, 1, 0], [], []>} : vector<8x128xf32>, vector<4x128xf32>, vector<8x4xf32> -> vector<8x4xf32>
    %63 = vector.broadcast %2 : vector<1x4xf32> to vector<8x4xf32>
    %64 = arith.addf %62, %63 : vector<8x4xf32>
    %65 = vector.broadcast %54 : vector<8x1xf32> to vector<8x4xf32>
    %66 = arith.subf %64, %65 : vector<8x4xf32>
    %67 = arith.mulf %66, %66 : vector<8x4xf32>
    %68 = arith.addf %52, %67 : vector<8x4xf32>
    %cst_24 = arith.constant 0.000000e+00 : f32
    %69 = vector.broadcast %cst_24 : f32 to vector<8x4xf32>
    %70 = arith.subf %69, %68 : vector<8x4xf32>
    %cst_25 = arith.constant dense<0xFF800000> : vector<8xf32>
    %71 = vector.multi_reduction <maximumf>, %70, %cst_25 [1] : vector<8x4xf32> to vector<8xf32>
    %72 = vector.shape_cast %71 : vector<8xf32> to vector<8x1xf32>
    %73 = vector.broadcast %72 : vector<8x1xf32> to vector<8x4xf32>
    %74 = arith.subf %70, %73 : vector<8x4xf32>
    %75 = math.exp %74 : vector<8x4xf32>
    %cst_26 = arith.constant dense<0.000000e+00> : vector<8xf32>
    %76 = vector.multi_reduction <add>, %75, %cst_26 [1] : vector<8x4xf32> to vector<8xf32>
    %77 = vector.shape_cast %76 : vector<8xf32> to vector<8x1xf32>
    %78 = vector.broadcast %77 : vector<8x1xf32> to vector<8x4xf32>
    %79 = arith.divf %75, %78 : vector<8x4xf32>
    %c0_27 = arith.constant 0 : index
    %c8 = arith.constant 8 : index
    %80 = vector.load %arg0[%c0_27, %c8] : memref<8x16xf32, #tpu.memory_space<vmem>>, vector<8x1xf32>
    %81 = vector.broadcast %80 : vector<8x1xf32> to vector<8x128xf32>
    %82 = vector.broadcast %0 : vector<1x128xf32> to vector<8x128xf32>
    %83 = arith.mulf %81, %82 : vector<8x128xf32>
    %84 = vector.broadcast %1 : vector<1x128xf32> to vector<8x128xf32>
    %85 = arith.addf %83, %84 : vector<8x128xf32>
    %cst_28 = arith.constant 0.000000e+00 : f32
    %86 = vector.broadcast %cst_28 : f32 to vector<8x128xf32>
    %87 = arith.maximumf %85, %86 : vector<8x128xf32>
    %cst_29 = arith.constant dense<0.000000e+00> : vector<8x4xf32>
    %88 = tpu.matmul %87, %3, %cst_29 {dimension_numbers = #tpu.dot_dimension_numbers<[1], [1], [0], [0], [0, 0, 1, 0], [], []>} : vector<8x128xf32>, vector<4x128xf32>, vector<8x4xf32> -> vector<8x4xf32>
    %89 = vector.broadcast %2 : vector<1x4xf32> to vector<8x4xf32>
    %90 = arith.addf %88, %89 : vector<8x4xf32>
    %91 = arith.mulf %79, %90 : vector<8x4xf32>
    %cst_30 = arith.constant dense<0.000000e+00> : vector<8xf32>
    %92 = vector.multi_reduction <add>, %91, %cst_30 [1] : vector<8x4xf32> to vector<8xf32>
    %93 = vector.shape_cast %92 : vector<8xf32> to vector<8x1xf32>
    %c0_31 = arith.constant 0 : index
    %c9 = arith.constant 9 : index
    %94 = vector.load %arg0[%c0_31, %c9] : memref<8x16xf32, #tpu.memory_space<vmem>>, vector<1x4xf32>
    %cst_32 = arith.constant dense<0.000000e+00> : vector<4xf32>
    %95 = vector.multi_reduction <add>, %79, %cst_32 [0] : vector<8x4xf32> to vector<4xf32>
    %96 = vector.shape_cast %95 : vector<4xf32> to vector<1x4xf32>
    %97 = tpu.iota {dimensions = array<i32: 0>} : vector<8x4xi32>
    %c0_i32 = arith.constant 0 : i32
    %98 = vector.broadcast %c0_i32 : i32 to vector<8x4xi32>
    %99 = arith.cmpi eq, %97, %98 : vector<8x4xi32>
    %100 = arith.addf %94, %96 : vector<1x4xf32>
    %cst_33 = arith.constant 0.000000e+00 : f32
    %101 = vector.shape_cast %100 : vector<1x4xf32> to vector<1x4xf32>
    %102 = vector.broadcast %101 : vector<1x4xf32> to vector<8x4xf32>
    %103 = vector.broadcast %cst_33 : f32 to vector<8x4xf32>
    %104 = arith.select %99, %102, %103 : vector<8x4xi1>, vector<8x4xf32>
    %cst_34 = arith.constant 0.000000e+00 : f32
    %105 = vector.broadcast %cst_34 : f32 to vector<8x119xf32>
    %106 = tpu.concatenate %93, %79, %104, %105 in 1 : vector<8x1xf32>, vector<8x4xf32>, vector<8x4xf32>, vector<8x119xf32> -> vector<8x128xf32>
    %c0_35 = arith.constant 0 : index
    %c0_36 = arith.constant 0 : index
    %107 = vector.load %arg2[%c0_35, %c0_36] : memref<8x128xf32, #tpu.memory_space<vmem>>, vector<8x128xf32>
    tpu.vector_store %arg2[%c0_35, %c0_36], %106 {strides = array<i32>} : memref<8x128xf32, #tpu.memory_space<vmem>>, vector<8x128xf32>,
    return
  }
}

</mosaic_0001>

<llo_original>
// kernel: tpu_custom_call.1
$region0: #{tpu_custom_call.1}
  #allocation0 [shape = 'u32[]', space=smem, size = 0x4, offset = 0x4, fixed_abs, tag = 'smem constant byte address 0x4 - core index']
  #allocation1 [shape = 'u32[144,128]{1,0:T(1,128)}', space=vmem, size = 0x12000, scoped, tag = 'internal scratch']
  %s0 = inlined_call_operand.hbm [shape: f32[8,16], index: 0, kind: input, shape index: {}]
  %s1 = inlined_call_operand.hbm [shape: f32[8,128], index: 1, kind: input, shape index: {}]
  %s2 = inlined_call_operand.hbm [shape: f32[8,128], index: 2, kind: output, shape index: {}]
  %s3 = sld [smem:[#allocation0]]
  $region26: #{tpu_custom_call.1} parent=0
    _
  %s5 = ssub.s32 1, %s3
  %s6 = scalar_select 0, %s5, %s3
  $region1: #{tpu_custom_call.1} parent=0
    #allocation2 [shape = 'u8[4096]{0}', space=vmem, size = 0x1000, scoped, tag = 'input window, operand 0, single buffered']
    #allocation3 [shape = 's32[1]{0}', space=sflag, size = 0x4, scoped, tag = 'scoped memory for tpu_custom_call.1']
    #allocation4 [shape = 's32[1]{0}', space=sflag, size = 0x4, scoped, tag = 'scoped memory for tpu_custom_call.1']
    #allocation5 [shape = 'u8[4096]{0}', space=vmem, size = 0x1000, scoped, tag = 'input window, operand 1, single buffered']
    #allocation6 [shape = 's32[1]{0}', space=sflag, size = 0x4, scoped, tag = 'scoped memory for tpu_custom_call.1']
    #allocation7 [shape = 'u8[4096]{0}', space=vmem, size = 0x1000, scoped, tag = 'output window, operand 0, single buffered']
    %7 = vsyncpa [#allocation3], 0
    %8 = vsyncpa [#allocation6], 0
    %9 = vsyncpa [#allocation4], 0
    // Predicated region
    $region2: #{tpu_custom_call.1} parent=1 // pred_check
      _
    $region3: #{tpu_custom_call.1} parent=1 // pred_check_branch
      %11 = sbr.rel (0) target = $region5
    $region4: #{tpu_custom_call.1} parent=1 // pred_region
      %s13 = ssub.s32 128, 128
      %14 = vsyncadd [#allocation3], %s13
      %s16 = sshll.u32 [#allocation2], 4
      %s17 = int_to_ptr.vmem [resolvable:$true] %s16
      %19 = dma.hbm_to_vmem [thread:$0]  %s0, 128, %s17, [#allocation3]
    $region5: #{tpu_custom_call.1} parent=1 // pred_fallthru
      _
    // Predicated region
    $region6: #{tpu_custom_call.1} parent=1 // pred_check
      _
    $region7: #{tpu_custom_call.1} parent=1 // pred_check_branch
      %21 = sbr.rel (0) target = $region9
    $region8: #{tpu_custom_call.1} parent=1 // pred_region
      %s23 = ssub.s32 128, 128
      %24 = vsyncadd [#allocation6], %s23
      %s26 = sshll.u32 [#allocation5], 4
      %s27 = int_to_ptr.vmem [resolvable:$true] %s26
      %29 = dma.hbm_to_vmem [thread:$0]  %s1, 128, %s27, [#allocation6]
    $region9: #{tpu_custom_call.1} parent=1 // pred_fallthru
      _
    // Predicated region
    $region10: #{tpu_custom_call.1} parent=1 // pred_check
      _
    $region11: #{tpu_custom_call.1} parent=1 // pred_check_branch
      %31 = sbr.rel (0) target = $region13
    $region12: #{tpu_custom_call.1} parent=1 // pred_region
      %32 = dma.done [#allocation3], 128
    $region13: #{tpu_custom_call.1} parent=1 // pred_fallthru
      _
    // Predicated region
    $region14: #{tpu_custom_call.1} parent=1 // pred_check
      _
    $region15: #{tpu_custom_call.1} parent=1 // pred_check_branch
      %34 = sbr.rel (0) target = $region17
    $region16: #{tpu_custom_call.1} parent=1 // pred_region
      %35 = dma.done [#allocation6], 128
    $region17: #{tpu_custom_call.1} parent=1 // pred_fallthru
      _
    %v36 = vld [vmem:[#allocation5] sm:$0x1]
    %v37 = vld [vmem:[#allocation5 + $0x1] sm:$0x1]
    %v38 = vld [vmem:[#allocation5 + $0x2] sm:$0x1]
    %v39 = vld [vmem:[#allocation5 + $0x3] sm:$0xf]
    %v40 = vld [vmem:[#allocation2] sm:$0xff]
    %42 = vset.pattern.permute.xlu0 0
    %43 = vperm.xlu0 %42, %v40
    %v44 = vpop.permute.xlu0 %43
    %v46 = vlaneseq
    %v47 = vshrl.u32 %v46, 7
    %v48 = vsub.s32 0, %v47
    %v49 = vrot.slane %v36, %v48
    %v50 = vmul.f32 %v44, %v49
    %v51 = vlaneseq
    %v52 = vshrl.u32 %v51, 7
    %v53 = vsub.s32 0, %v52
    %v54 = vrot.slane %v37, %v53
    %v55 = vadd.f32 %v50, %v54
    %v56 = vmax.f32 %v55, 0.0
    %v57 = vlaneseq
    %v58 = vshrl.u32 %v57, 7
    %v59 = vsub.s32 0, %v58
    %v60 = vrot.slane %v38, %v59
    %61 = vmatprep.subr.mxu0 0.0
    %62 = vmatpush1.xpose.msra.mxu0 0.0
    %63 = vmatprep.subr.mxu0 0.0
    %64 = vmatpush1.xpose.msra.mxu0 0.0
    %65 = vmatprep.subr.mxu0 0.0
    %66 = vmatpush1.xpose.msra.mxu0 0.0
    %67 = vmatprep.subr.mxu0 0.0
    %68 = vmatpush1.xpose.msra.mxu0 0.0
    %69 = vmatprep.subr.mxu0 0.0
    %70 = vmatpush1.xpose.msra.mxu0 0.0
    %71 = vmatprep.subr.mxu0 0.0
    %72 = vmatpush1.xpose.msra.mxu0 0.0
    %73 = vmatprep.subr.mxu0 0.0
    %74 = vmatpush1.xpose.msra.mxu0 0.0
    %75 = vmatprep.subr.mxu0 0.0
    %76 = vmatpush1.xpose.msra.mxu0 0.0
    %77 = vmatprep.subr.mxu0 0.0
    %78 = vmatpush1.xpose.msra.mxu0 0.0
    %79 = vmatprep.subr.mxu0 0.0
    %80 = vmatpush1.xpose.msra.mxu0 0.0
    %81 = vmatprep.subr.mxu0 0.0
    %82 = vmatpush1.xpose.msra.mxu0 0.0
    %83 = vmatprep.subr.mxu0 0.0
    %84 = vmatpush1.xpose.msra.mxu0 0.0
    %85 = vmatprep.subr.mxu0 0.0
    %86 = vmatpush1.xpose.msra.mxu0 0.0
    %87 = vmatprep.subr.mxu0 0.0
    %88 = vmatpush1.xpose.msra.mxu0 0.0
    %89 = vmatprep.subr.mxu0 0.0
    %90 = vmatpush1.xpose.msra.mxu0 0.0
    %91 = vmatprep.subr.mxu0 0.0
    %92 = vmatpush1.xpose.msra.mxu0 %v39
    %93 = vmatprep.subr.mxu0 0.0
    %94 = vmatpush2.xpose.msra.mxu0 0.0
    %95 = vmatprep.subr.mxu0 0.0
    %96 = vmatpush2.xpose.msra.mxu0 0.0
    %97 = vmatprep.subr.mxu0 0.0
    %98 = vmatpush2.xpose.msra.mxu0 0.0
    %99 = vmatprep.subr.mxu0 0.0
    %100 = vmatpush2.xpose.msra.mxu0 0.0
    %101 = vmatprep.subr.mxu0 0.0
    %102 = vmatpush2.xpose.msra.mxu0 0.0
    %103 = vmatprep.subr.mxu0 0.0
    %104 = vmatpush2.xpose.msra.mxu0 0.0
    %105 = vmatprep.subr.mxu0 0.0
    %106 = vmatpush2.xpose.msra.mxu0 0.0
    %107 = vmatprep.subr.mxu0 0.0
    %108 = vmatpush2.xpose.msra.mxu0 0.0
    %109 = vmatprep.subr.mxu0 0.0
    %110 = vmatpush2.xpose.msra.mxu0 0.0
    %111 = vmatprep.subr.mxu0 0.0
    %112 = vmatpush2.xpose.msra.mxu0 0.0
    %113 = vmatprep.subr.mxu0 0.0
    %114 = vmatpush2.xpose.msra.mxu0 0.0
    %115 = vmatprep.subr.mxu0 0.0
    %116 = vmatpush2.xpose.msra.mxu0 0.0
    %117 = vmatprep.subr.mxu0 0.0
    %118 = vmatpush2.xpose.msra.mxu0 0.0
    %119 = vmatprep.subr.mxu0 0.0
    %120 = vmatpush2.xpose.msra.mxu0 0.0
    %121 = vmatprep.subr.mxu0 0.0
    %122 = vmatpush2.xpose.msra.mxu0 0.0
    %123 = vmatprep.subr.mxu0 0.0
    %124 = vmatpush2.xpose.msra.mxu0 0.0
    %125 = vmatprep.mubr.f32.mxu0 0.0
    %126 = vmatmul.mubr.f32.gmra.mxu0 %v56
    %v127 = vpop.f32.mrf.mxu0
    %v128 = vadd.f32 %v60, %v127
    %v129 = vpop.f32.mrf.mxu0
    %130 = vdwg.mxu0
    %131 = vset.pattern.permute.xlu0 1
    %132 = vperm.xlu0 %131, %v40
    %v133 = vpop.permute.xlu0 %132
    %v135 = vsub.f32 %v128, %v133
    %v136 = vmul.f32 %v135, %v135
    %v137 = vadd.f32 %v136, 0.0
    %138 = vset.pattern.permute.xlu0 2
    %139 = vperm.xlu0 %138, %v40
    %v140 = vpop.permute.xlu0 %139
    %v142 = vmul.f32 %v140, %v49
    %v143 = vadd.f32 %v142, %v54
    %v144 = vmax.f32 %v143, 0.0
    %145 = vmatprep.subr.mxu0 0.0
    %146 = vmatpush1.xpose.msra.mxu0 0.0
    %147 = vmatprep.subr.mxu0 0.0
    %148 = vmatpush1.xpose.msra.mxu0 0.0
    %149 = vmatprep.subr.mxu0 0.0
    %150 = vmatpush1.xpose.msra.mxu0 0.0
    %151 = vmatprep.subr.mxu0 0.0
    %152 = vmatpush1.xpose.msra.mxu0 0.0
    %153 = vmatprep.subr.mxu0 0.0
    %154 = vmatpush1.xpose.msra.mxu0 0.0
    %155 = vmatprep.subr.mxu0 0.0
    %156 = vmatpush1.xpose.msra.mxu0 0.0
    %157 = vmatprep.subr.mxu0 0.0
    %158 = vmatpush1.xpose.msra.mxu0 0.0
    %159 = vmatprep.subr.mxu0 0.0
    %160 = vmatpush1.xpose.msra.mxu0 0.0
    %161 = vmatprep.subr.mxu0 0.0
    %162 = vmatpush1.xpose.msra.mxu0 0.0
    %163 = vmatprep.subr.mxu0 0.0
    %164 = vmatpush1.xpose.msra.mxu0 0.0
    %165 = vmatprep.subr.mxu0 0.0
    %166 = vmatpush1.xpose.msra.mxu0 0.0
    %167 = vmatprep.subr.mxu0 0.0
    %168 = vmatpush1.xpose.msra.mxu0 0.0
    %169 = vmatprep.subr.mxu0 0.0
    %170 = vmatpush1.xpose.msra.mxu0 0.0
    %171 = vmatprep.subr.mxu0 0.0
    %172 = vmatpush1.xpose.msra.mxu0 0.0
    %173 = vmatprep.subr.mxu0 0.0
    %174 = vmatpush1.xpose.msra.mxu0 0.0
    %175 = vmatprep.subr.mxu0 0.0
    %176 = vmatpush1.xpose.msra.mxu0 %v39
    %177 = vmatprep.subr.mxu0 0.0
    %178 = vmatpush2.xpose.msra.mxu0 0.0
    %179 = vmatprep.subr.mxu0 0.0
    %180 = vmatpush2.xpose.msra.mxu0 0.0
    %181 = vmatprep.subr.mxu0 0.0
    %182 = vmatpush2.xpose.msra.mxu0 0.0
    %183 = vmatprep.subr.mxu0 0.0
    %184 = vmatpush2.xpose.msra.mxu0 0.0
    %185 = vmatprep.subr.mxu0 0.0
    %186 = vmatpush2.xpose.msra.mxu0 0.0
    %187 = vmatprep.subr.mxu0 0.0
    %188 = vmatpush2.xpose.msra.mxu0 0.0
    %189 = vmatprep.subr.mxu0 0.0
    %190 = vmatpush2.xpose.msra.mxu0 0.0
    %191 = vmatprep.subr.mxu0 0.0
    %192 = vmatpush2.xpose.msra.mxu0 0.0
    %193 = vmatprep.subr.mxu0 0.0
    %194 = vmatpush2.xpose.msra.mxu0 0.0
    %195 = vmatprep.subr.mxu0 0.0
    %196 = vmatpush2.xpose.msra.mxu0 0.0
    %197 = vmatprep.subr.mxu0 0.0
    %198 = vmatpush2.xpose.msra.mxu0 0.0
    %199 = vmatprep.subr.mxu0 0.0
    %200 = vmatpush2.xpose.msra.mxu0 0.0
    %201 = vmatprep.subr.mxu0 0.0
    %202 = vmatpush2.xpose.msra.mxu0 0.0
    %203 = vmatprep.subr.mxu0 0.0
    %204 = vmatpush2.xpose.msra.mxu0 0.0
    %205 = vmatprep.subr.mxu0 0.0
    %206 = vmatpush2.xpose.msra.mxu0 0.0
    %207 = vmatprep.subr.mxu0 0.0
    %208 = vmatpush2.xpose.msra.mxu0 0.0
    %209 = vmatprep.mubr.f32.mxu0 0.0
    %210 = vmatmul.mubr.f32.gmra.mxu0 %v144
    %v211 = vpop.f32.mrf.mxu0
    %v212 = vadd.f32 %v60, %v211
    %v213 = vpop.f32.mrf.mxu0
    %214 = vdwg.mxu0
    %215 = vset.pattern.permute.xlu0 3
    %216 = vperm.xlu0 %215, %v40
    %v217 = vpop.permute.xlu0 %216
    %v219 = vsub.f32 %v212, %v217
    %v220 = vmul.f32 %v219, %v219
    %v221 = vadd.f32 %v137, %v220
    %222 = vset.pattern.permute.xlu0 4
    %223 = vperm.xlu0 %222, %v40
    %v224 = vpop.permute.xlu0 %223
    %v226 = vmul.f32 %v224, %v49
    %v227 = vadd.f32 %v226, %v54
    %v228 = vmax.f32 %v227, 0.0
    %229 = vmatprep.subr.mxu0 0.0
    %230 = vmatpush1.xpose.msra.mxu0 0.0
    %231 = vmatprep.subr.mxu0 0.0
    %232 = vmatpush1.xpose.msra.mxu0 0.0
    %233 = vmatprep.subr.mxu0 0.0
    %234 = vmatpush1.xpose.msra.mxu0 0.0
    %235 = vmatprep.subr.mxu0 0.0
    %236 = vmatpush1.xpose.msra.mxu0 0.0
    %237 = vmatprep.subr.mxu0 0.0
    %238 = vmatpush1.xpose.msra.mxu0 0.0
    %239 = vmatprep.subr.mxu0 0.0
    %240 = vmatpush1.xpose.msra.mxu0 0.0
    %241 = vmatprep.subr.mxu0 0.0
    %242 = vmatpush1.xpose.msra.mxu0 0.0
    %243 = vmatprep.subr.mxu0 0.0
    %244 = vmatpush1.xpose.msra.mxu0 0.0
    %245 = vmatprep.subr.mxu0 0.0
    %246 = vmatpush1.xpose.msra.mxu0 0.0
    %247 = vmatprep.subr.mxu0 0.0
    %248 = vmatpush1.xpose.msra.mxu0 0.0
    %249 = vmatprep.subr.mxu0 0.0
    %250 = vmatpush1.xpose.msra.mxu0 0.0
    %251 = vmatprep.subr.mxu0 0.0
    %252 = vmatpush1.xpose.msra.mxu0 0.0
    %253 = vmatprep.subr.mxu0 0.0
    %254 = vmatpush1.xpose.msra.mxu0 0.0
    %255 = vmatprep.subr.mxu0 0.0
    %256 = vmatpush1.xpose.msra.mxu0 0.0
    %257 = vmatprep.subr.mxu0 0.0
    %258 = vmatpush1.xpose.msra.mxu0 0.0
    %259 = vmatprep.subr.mxu0 0.0
    %260 = vmatpush1.xpose.msra.mxu0 %v39
    %261 = vmatprep.subr.mxu0 0.0
    %262 = vmatpush2.xpose.msra.mxu0 0.0
    %263 = vmatprep.subr.mxu0 0.0
    %264 = vmatpush2.xpose.msra.mxu0 0.0
    %265 = vmatprep.subr.mxu0 0.0
    %266 = vmatpush2.xpose.msra.mxu0 0.0
    %267 = vmatprep.subr.mxu0 0.0
    %268 = vmatpush2.xpose.msra.mxu0 0.0
    %269 = vmatprep.subr.mxu0 0.0
    %270 = vmatpush2.xpose.msra.mxu0 0.0
    %271 = vmatprep.subr.mxu0 0.0
    %272 = vmatpush2.xpose.msra.mxu0 0.0
    %273 = vmatprep.subr.mxu0 0.0
    %274 = vmatpush2.xpose.msra.mxu0 0.0
    %275 = vmatprep.subr.mxu0 0.0
    %276 = vmatpush2.xpose.msra.mxu0 0.0
    %277 = vmatprep.subr.mxu0 0.0
    %278 = vmatpush2.xpose.msra.mxu0 0.0
    %279 = vmatprep.subr.mxu0 0.0
    %280 = vmatpush2.xpose.msra.mxu0 0.0
    %281 = vmatprep.subr.mxu0 0.0
    %282 = vmatpush2.xpose.msra.mxu0 0.0
    %283 = vmatprep.subr.mxu0 0.0
    %284 = vmatpush2.xpose.msra.mxu0 0.0
    %285 = vmatprep.subr.mxu0 0.0
    %286 = vmatpush2.xpose.msra.mxu0 0.0
    %287 = vmatprep.subr.mxu0 0.0
    %288 = vmatpush2.xpose.msra.mxu0 0.0
    %289 = vmatprep.subr.mxu0 0.0
    %290 = vmatpush2.xpose.msra.mxu0 0.0
    %291 = vmatprep.subr.mxu0 0.0
    %292 = vmatpush2.xpose.msra.mxu0 0.0
    %293 = vmatprep.mubr.f32.mxu0 0.0
    %294 = vmatmul.mubr.f32.gmra.mxu0 %v228
    %v295 = vpop.f32.mrf.mxu0
    %v296 = vadd.f32 %v60, %v295
    %v297 = vpop.f32.mrf.mxu0
    %298 = vdwg.mxu0
    %299 = vset.pattern.permute.xlu0 5
    %300 = vperm.xlu0 %299, %v40
    %v301 = vpop.permute.xlu0 %300
    %v303 = vsub.f32 %v296, %v301
    %v304 = vmul.f32 %v303, %v303
    %v305 = vadd.f32 %v221, %v304
    %306 = vset.pattern.permute.xlu0 6
    %307 = vperm.xlu0 %306, %v40
    %v308 = vpop.permute.xlu0 %307
    %v310 = vmul.f32 %v308, %v49
    %v311 = vadd.f32 %v310, %v54
    %v312 = vmax.f32 %v311, 0.0
    %313 = vmatprep.subr.mxu0 0.0
    %314 = vmatpush1.xpose.msra.mxu0 0.0
    %315 = vmatprep.subr.mxu0 0.0
    %316 = vmatpush1.xpose.msra.mxu0 0.0
    %317 = vmatprep.subr.mxu0 0.0
    %318 = vmatpush1.xpose.msra.mxu0 0.0
    %319 = vmatprep.subr.mxu0 0.0
    %320 = vmatpush1.xpose.msra.mxu0 0.0
    %321 = vmatprep.subr.mxu0 0.0
    %322 = vmatpush1.xpose.msra.mxu0 0.0
    %323 = vmatprep.subr.mxu0 0.0
    %324 = vmatpush1.xpose.msra.mxu0 0.0
    %325 = vmatprep.subr.mxu0 0.0
    %326 = vmatpush1.xpose.msra.mxu0 0.0
    %327 = vmatprep.subr.mxu0 0.0
    %328 = vmatpush1.xpose.msra.mxu0 0.0
    %329 = vmatprep.subr.mxu0 0.0
    %330 = vmatpush1.xpose.msra.mxu0 0.0
    %331 = vmatprep.subr.mxu0 0.0
    %332 = vmatpush1.xpose.msra.mxu0 0.0
    %333 = vmatprep.subr.mxu0 0.0
    %334 = vmatpush1.xpose.msra.mxu0 0.0
    %335 = vmatprep.subr.mxu0 0.0
    %336 = vmatpush1.xpose.msra.mxu0 0.0
    %337 = vmatprep.subr.mxu0 0.0
    %338 = vmatpush1.xpose.msra.mxu0 0.0
    %339 = vmatprep.subr.mxu0 0.0
    %340 = vmatpush1.xpose.msra.mxu0 0.0
    %341 = vmatprep.subr.mxu0 0.0
    %342 = vmatpush1.xpose.msra.mxu0 0.0
    %343 = vmatprep.subr.mxu0 0.0
    %344 = vmatpush1.xpose.msra.mxu0 %v39
    %345 = vmatprep.subr.mxu0 0.0
    %346 = vmatpush2.xpose.msra.mxu0 0.0
    %347 = vmatprep.subr.mxu0 0.0
    %348 = vmatpush2.xpose.msra.mxu0 0.0
    %349 = vmatprep.subr.mxu0 0.0
    %350 = vmatpush2.xpose.msra.mxu0 0.0
    %351 = vmatprep.subr.mxu0 0.0
    %352 = vmatpush2.xpose.msra.mxu0 0.0
    %353 = vmatprep.subr.mxu0 0.0
    %354 = vmatpush2.xpose.msra.mxu0 0.0
    %355 = vmatprep.subr.mxu0 0.0
    %356 = vmatpush2.xpose.msra.mxu0 0.0
    %357 = vmatprep.subr.mxu0 0.0
    %358 = vmatpush2.xpose.msra.mxu0 0.0
    %359 = vmatprep.subr.mxu0 0.0
    %360 = vmatpush2.xpose.msra.mxu0 0.0
    %361 = vmatprep.subr.mxu0 0.0
    %362 = vmatpush2.xpose.msra.mxu0 0.0
    %363 = vmatprep.subr.mxu0 0.0
    %364 = vmatpush2.xpose.msra.mxu0 0.0
    %365 = vmatprep.subr.mxu0 0.0
    %366 = vmatpush2.xpose.msra.mxu0 0.0
    %367 = vmatprep.subr.mxu0 0.0
    %368 = vmatpush2.xpose.msra.mxu0 0.0
    %369 = vmatprep.subr.mxu0 0.0
    %370 = vmatpush2.xpose.msra.mxu0 0.0
    %371 = vmatprep.subr.mxu0 0.0
    %372 = vmatpush2.xpose.msra.mxu0 0.0
    %373 = vmatprep.subr.mxu0 0.0
    %374 = vmatpush2.xpose.msra.mxu0 0.0
    %375 = vmatprep.subr.mxu0 0.0
    %376 = vmatpush2.xpose.msra.mxu0 0.0
    %377 = vmatprep.mubr.f32.mxu0 0.0
    %378 = vmatmul.mubr.f32.gmra.mxu0 %v312
    %v379 = vpop.f32.mrf.mxu0
    %v380 = vadd.f32 %v60, %v379
    %v381 = vpop.f32.mrf.mxu0
    %382 = vdwg.mxu0
    %383 = vset.pattern.permute.xlu0 7
    %384 = vperm.xlu0 %383, %v40
    %v385 = vpop.permute.xlu0 %384
    %v387 = vsub.f32 %v380, %v385
    %v388 = vmul.f32 %v387, %v387
    %v389 = vadd.f32 %v305, %v388
    %v390 = vsub.f32 0.0, %v389
    %vm391 = vcmask 31744
    %v392 = vsel %vm391, %v390, -inf
    %393 = vmax.xlane.f32.xlu0 %v392
    %v394 = vpop.xlane.xlu0 %393
    %v395 = vsub.f32 %v390, %v394
    %v396 = vmul.f32 %v395, 1.442695
    %v397 = vpow.pop %v396
    %v398 = vsel %vm391, %v397, 0.0
    %399 = vadd.xlane.f32.xlu0 %v398
    %v400 = vpop.xlane.xlu0 %399
    %v401 = vrcp.pop %v400
    %v402 = vmul.f32 %v397, %v401
    %403 = vset.pattern.permute.xlu0 8
    %404 = vperm.xlu0 %403, %v40
    %v405 = vpop.permute.xlu0 %404
    %v407 = vmul.f32 %v405, %v49
    %v408 = vadd.f32 %v407, %v54
    %v409 = vmax.f32 %v408, 0.0
    %410 = vmatprep.subr.mxu0 0.0
    %411 = vmatpush1.xpose.msra.mxu0 0.0
    %412 = vmatprep.subr.mxu0 0.0
    %413 = vmatpush1.xpose.msra.mxu0 0.0
    %414 = vmatprep.subr.mxu0 0.0
    %415 = vmatpush1.xpose.msra.mxu0 0.0
    %416 = vmatprep.subr.mxu0 0.0
    %417 = vmatpush1.xpose.msra.mxu0 0.0
    %418 = vmatprep.subr.mxu0 0.0
    %419 = vmatpush1.xpose.msra.mxu0 0.0
    %420 = vmatprep.subr.mxu0 0.0
    %421 = vmatpush1.xpose.msra.mxu0 0.0
    %422 = vmatprep.subr.mxu0 0.0
    %423 = vmatpush1.xpose.msra.mxu0 0.0
    %424 = vmatprep.subr.mxu0 0.0
    %425 = vmatpush1.xpose.msra.mxu0 0.0
    %426 = vmatprep.subr.mxu0 0.0
    %427 = vmatpush1.xpose.msra.mxu0 0.0
    %428 = vmatprep.subr.mxu0 0.0
    %429 = vmatpush1.xpose.msra.mxu0 0.0
    %430 = vmatprep.subr.mxu0 0.0
    %431 = vmatpush1.xpose.msra.mxu0 0.0
    %432 = vmatprep.subr.mxu0 0.0
    %433 = vmatpush1.xpose.msra.mxu0 0.0
    %434 = vmatprep.subr.mxu0 0.0
    %435 = vmatpush1.xpose.msra.mxu0 0.0
    %436 = vmatprep.subr.mxu0 0.0
    %437 = vmatpush1.xpose.msra.mxu0 0.0
    %438 = vmatprep.subr.mxu0 0.0
    %439 = vmatpush1.xpose.msra.mxu0 0.0
    %440 = vmatprep.subr.mxu0 0.0
    %441 = vmatpush1.xpose.msra.mxu0 %v39
    %442 = vmatprep.subr.mxu0 0.0
    %443 = vmatpush2.xpose.msra.mxu0 0.0
    %444 = vmatprep.subr.mxu0 0.0
    %445 = vmatpush2.xpose.msra.mxu0 0.0
    %446 = vmatprep.subr.mxu0 0.0
    %447 = vmatpush2.xpose.msra.mxu0 0.0
    %448 = vmatprep.subr.mxu0 0.0
    %449 = vmatpush2.xpose.msra.mxu0 0.0
    %450 = vmatprep.subr.mxu0 0.0
    %451 = vmatpush2.xpose.msra.mxu0 0.0
    %452 = vmatprep.subr.mxu0 0.0
    %453 = vmatpush2.xpose.msra.mxu0 0.0
    %454 = vmatprep.subr.mxu0 0.0
    %455 = vmatpush2.xpose.msra.mxu0 0.0
    %456 = vmatprep.subr.mxu0 0.0
    %457 = vmatpush2.xpose.msra.mxu0 0.0
    %458 = vmatprep.subr.mxu0 0.0
    %459 = vmatpush2.xpose.msra.mxu0 0.0
    %460 = vmatprep.subr.mxu0 0.0
    %461 = vmatpush2.xpose.msra.mxu0 0.0
    %462 = vmatprep.subr.mxu0 0.0
    %463 = vmatpush2.xpose.msra.mxu0 0.0
    %464 = vmatprep.subr.mxu0 0.0
    %465 = vmatpush2.xpose.msra.mxu0 0.0
    %466 = vmatprep.subr.mxu0 0.0
    %467 = vmatpush2.xpose.msra.mxu0 0.0
    %468 = vmatprep.subr.mxu0 0.0
    %469 = vmatpush2.xpose.msra.mxu0 0.0
    %470 = vmatprep.subr.mxu0 0.0
    %471 = vmatpush2.xpose.msra.mxu0 0.0
    %472 = vmatprep.subr.mxu0 0.0
    %473 = vmatpush2.xpose.msra.mxu0 0.0
    %474 = vmatprep.mubr.f32.mxu0 0.0
    %475 = vmatmul.mubr.f32.gmra.mxu0 %v409
    %v476 = vpop.f32.mrf.mxu0
    %v477 = vadd.f32 %v60, %v476
    %v478 = vpop.f32.mrf.mxu0
    %479 = vdwg.mxu0
    %v480 = vmul.f32 %v402, %v477
    %v481 = vsel %vm391, %v480, 0.0
    %482 = vadd.xlane.f32.xlu0 %v481
    %v483 = vpop.xlane.xlu0 %482
    %v484 = vld [vmem:[#allocation2] sm:$0x1]
    %v485 = vsel %vm391, %v402, 0.0
    %v486 = vrot.slane %v485, 4
    %v487 = vadd.f32 %v485, %v486
    %v488 = vrot.slane %v487, 2
    %v489 = vadd.f32 %v487, %v488
    %v490 = vrot.slane %v489, 1
    %v491 = vadd.f32 %v489, %v490
    %v492 = vlaneseq
    %v493 = vshrl.u32 %v492, 7
    %vm494 = vcmp.eq.s32.totalorder %v493, 0
    %496 = vrot.lane.b32.xlu0 %v491, 9
    %v497 = vpop.permute.xlu0 %496
    %v499 = vadd.f32 %v484, %v497
    %v500 = vlaneseq
    %v501 = vshrl.u32 %v500, 7
    %v502 = vsub.s32 0, %v501
    %v503 = vrot.slane %v499, %v502
    %v504 = vsel %vm494, %v503, 0.0
    %506 = vrot.lane.b32.xlu0 %v402, 1
    %v507 = vpop.permute.xlu0 %506
    %510 = vrot.lane.b32.xlu0 %v504, 124
    %v511 = vpop.permute.xlu0 %510
    %vm513 = vcmask 7168
    %v514 = vsel %vm513, %v483, %v507
    %vm515 = vcmask 39936
    %v516 = vsel %vm515, %v514, %v511
    %vm517 = vcmask 72704
    %v518 = vsel %vm517, %v516, 0.0
    %519 = vst [vmem:[#allocation7] sm:$0xff] %v518
    // Predicated region
    $region18: #{tpu_custom_call.1} parent=1 // pred_check
      _
    $region19: #{tpu_custom_call.1} parent=1 // pred_check_branch
      %521 = sbr.rel (0) target = $region21
    $region20: #{tpu_custom_call.1} parent=1 // pred_region
      %s523 = ssub.s32 128, 128
      %524 = vsyncadd [#allocation4], %s523
      %s526 = sshll.u32 [#allocation7], 4
      %s527 = int_to_ptr.vmem [resolvable:$true] %s526
      %529 = dma.vmem_to_hbm [thread:$0]  %s527, 128, %s2, [#allocation4]
    $region21: #{tpu_custom_call.1} parent=1 // pred_fallthru
      _
    // Predicated region
    $region22: #{tpu_custom_call.1} parent=1 // pred_check
      _
    $region23: #{tpu_custom_call.1} parent=1 // pred_check_branch
      %531 = sbr.rel (0) target = $region25
    $region24: #{tpu_custom_call.1} parent=1 // pred_region
      %532 = dma.done [#allocation4], 128
    $region25: #{tpu_custom_call.1} parent=1 // pred_fallthru
      _
    %533 = vsyncpa [#allocation3], 1
    %534 = vsyncpa [#allocation6], 1
    %535 = vsyncpa [#allocation4], 1

</llo_original>
